<compile_context>
chip_gen: v5e
topology: v5e:2x2
jax: 0.10.0
libtpu: 0.0.40
codegen_flags: <defaults>
</compile_context>

<pallas_src>
import functools

import jax
import jax.numpy as jnp
from jax.experimental import pallas as pl
from jax.experimental.pallas import tpu as pltpu

LN_EPS = 1e-5


def _round_up(x, m):
    return ((x + m - 1) // m) * m


def _pff_kernel(x_ref, w1_ref, b1_ref, w2_ref, b2_ref, g_ref, beta_ref,
                o_ref, acc_ref, *, compute_dtype):
    j = pl.program_id(1)

    @pl.when(j == 0)
    def _init():
        acc_ref[...] = jnp.zeros_like(acc_ref)

    # fc1 chunk + ReLU (MXU, low-precision operands, f32 accumulate),
    # then accumulate the fc2 chunk contribution into the f32 scratch.
    x_mxu = x_ref[...].astype(compute_dtype)
    h = jnp.dot(x_mxu, w1_ref[...], preferred_element_type=jnp.float32)
    h = jnp.maximum(h + b1_ref[...].astype(jnp.float32), 0.0)
    acc_ref[...] += jnp.dot(h.astype(compute_dtype), w2_ref[...],
                            preferred_element_type=jnp.float32)

    @pl.when(j == pl.num_programs(1) - 1)
    def _finalize():
        # dropout(p=0.0) is the identity (eval mode).
        # TODO(synk): training-mode dropout (p>0) would need pltpu.prng_random_bits.
        z = (acc_ref[...] + b2_ref[...].astype(jnp.float32)
             + x_ref[...].astype(jnp.float32))              # residual in f32
        mean = jnp.mean(z, axis=-1, keepdims=True)
        zc = z - mean
        var = jnp.mean(zc * zc, axis=-1, keepdims=True)      # biased variance
        inv = jax.lax.rsqrt(var + LN_EPS)                    # EUP slot, off MXU path
        out = (zc * inv * g_ref[...].astype(jnp.float32)
               + beta_ref[...].astype(jnp.float32))
        o_ref[...] = out.astype(o_ref.dtype)


def position_wise_feed_forward(x, w1, b1, w2, b2, gamma, beta, *,
                               tm=256, th=512, compute_dtype=jnp.bfloat16):
    """x: (B, S, D). Linear weights stored as (in, out). Returns (B, S, D)."""
    B, S, D = x.shape
    H = w1.shape[1]
    M = B * S

    # ---- row tiling: clamp for tiny inputs, zero-pad rows to a tile multiple.
    tm_eff = min(tm, _round_up(M, 8))          # tm default is a multiple of 128
    M_pad = _round_up(M, tm_eff)

    # ---- hidden tiling: single chunk if H fits, else 128-aligned chunks.
    if H <= th:
        th_eff = H
    else:
        assert th % 128 == 0, "hidden chunk must be 128-aligned"
        th_eff = th
    H_pad = _round_up(H, th_eff)

    x2 = x.reshape(M, D)
    if M_pad != M:
        x2 = jnp.pad(x2, ((0, M_pad - M), (0, 0)))

    w1c = w1.astype(compute_dtype)
    w2c = w2.astype(compute_dtype)
    b1_2 = b1.reshape(1, H)
    if H_pad != H:                             # zero-padded H contributes nothing
        w1c = jnp.pad(w1c, ((0, 0), (0, H_pad - H)))
        b1_2 = jnp.pad(b1_2, ((0, 0), (0, H_pad - H)))
        w2c = jnp.pad(w2c, ((0, H_pad - H), (0, 0)))
    b2_2 = b2.reshape(1, D)
    g_2 = gamma.reshape(1, D)
    be_2 = beta.reshape(1, D)

    n_i = M_pad // tm_eff
    n_j = H_pad // th_eff

    # ---- explicit VMEM budget (double-buffered tiles + scratch) with headroom.
    wbytes = jnp.dtype(compute_dtype).itemsize
    xbytes = x.dtype.itemsize
    vmem_bytes = (
        2 * tm_eff * D * xbytes                       # x tiles (double-buffered)
        + 2 * tm_eff * D * xbytes                     # out tiles
        + 2 * (D * th_eff + th_eff * D) * wbytes      # W1/W2 chunks
        + 2 * (th_eff + 3 * D) * 4                    # b1/b2/gamma/beta
        + tm_eff * D * 4                              # f32 accumulator scratch
    )
    vmem_limit = int(min(max(2 * vmem_bytes + (8 << 20), 32 << 20), 100 << 20))

    cost = pl.CostEstimate(
        flops=4 * M_pad * D * H_pad,                  # two matmuls
        transcendentals=M_pad,                        # one rsqrt per row
        bytes_accessed=(2 * M_pad * D * xbytes        # x in + out
                        + 2 * D * H_pad * wbytes      # W1 + W2
                        + (H_pad + 3 * D) * 4),
    )

    out = pl.pallas_call(
        functools.partial(_pff_kernel, compute_dtype=compute_dtype),
        out_shape=jax.ShapeDtypeStruct((M_pad, D), x.dtype),
        grid_spec=pltpu.PrefetchScalarGridSpec(
            num_scalar_prefetch=0,
            grid=(n_i, n_j),
            in_specs=[
                pl.BlockSpec((tm_eff, D), lambda i, j: (i, 0)),   # x rows
                pl.BlockSpec((D, th_eff), lambda i, j: (0, j)),   # W1 chunk
                pl.BlockSpec((1, th_eff), lambda i, j: (0, j)),   # b1 chunk
                pl.BlockSpec((th_eff, D), lambda i, j: (j, 0)),   # W2 chunk
                pl.BlockSpec((1, D), lambda i, j: (0, 0)),        # b2
                pl.BlockSpec((1, D), lambda i, j: (0, 0)),        # gamma
                pl.BlockSpec((1, D), lambda i, j: (0, 0)),        # beta
            ],
            out_specs=pl.BlockSpec((tm_eff, D), lambda i, j: (i, 0)),
            scratch_shapes=[pltpu.VMEM((tm_eff, D), jnp.float32)],
        ),
        compiler_params=pltpu.CompilerParams(
            dimension_semantics=("parallel", "arbitrary"),
            vmem_limit_bytes=vmem_limit,
        ),
        cost_estimate=cost,
    )(x2, w1c, b1_2, w2c, b2_2, g_2, be_2)

    return out[:M].reshape(B, S, D)


if __name__ == "__main__":
    # Small, deterministic setup: batch=2, seq=8, dim_model=32, hidden=64
    B, S, D, H = 2, 8, 32, 64
    key = jax.random.PRNGKey(0)
    kx, k1, k2, k3, k4 = jax.random.split(key, 5)

    x = jax.random.normal(kx, (B, S, D), dtype=jnp.float32)

    # fc1: Linear(D, H) — weights stored as (in, out) so y = x @ w + b
    w1 = jax.random.normal(k1, (D, H), dtype=jnp.float32) * (1.0 / jnp.sqrt(D))
    b1 = jax.random.normal(k2, (H,), dtype=jnp.float32) * 0.01
    # fc2: Linear(H, D)
    w2 = jax.random.normal(k3, (H, D), dtype=jnp.float32) * (1.0 / jnp.sqrt(H))
    b2 = jax.random.normal(k4, (D,), dtype=jnp.float32) * 0.01
    # LayerNorm(D): default init gamma=1, beta=0
    gamma = jnp.ones((D,), dtype=jnp.float32)
    beta = jnp.zeros((D,), dtype=jnp.float32)

    out = position_wise_feed_forward(x, w1, b1, w2, b2, gamma, beta)
    jax.block_until_ready(out)

    # Reference with the same matmul precision (bf16 operands, f32 accumulation);
    # residual + LayerNorm in f32, matching the kernel.
    cd = jnp.bfloat16
    x2 = x.reshape(-1, D)
    h_ref = jnp.maximum(
        jnp.dot(x2.astype(cd), w1.astype(cd),
                preferred_element_type=jnp.float32) + b1, 0.0)
    y_ref = jnp.dot(h_ref.astype(cd), w2.astype(cd),
                    preferred_element_type=jnp.float32) + b2
    z_ref = y_ref + x2
    mu = z_ref.mean(-1, keepdims=True)
    var = ((z_ref - mu) ** 2).mean(-1, keepdims=True)
    ref = ((z_ref - mu) / jnp.sqrt(var + LN_EPS) * gamma + beta).reshape(B, S, D)

    err = float(jnp.max(jnp.abs(out - ref)))
    assert jnp.allclose(out, ref, atol=1e-2, rtol=1e-2), f"max abs err = {err}"

    print("KERNEL_OK")
</pallas_src>

<mosaic_0001>
module attributes {stable_mosaic.version = 11 : i64} {
  func.func @_pff_kernel(%arg0: i32, %arg1: i32, %arg2: memref<16x32xf32, #tpu.memory_space<vmem>>, %arg3: memref<32x64xbf16, #tpu.memory_space<vmem>>, %arg4: memref<1x64xf32, #tpu.memory_space<vmem>>, %arg5: memref<64x32xbf16, #tpu.memory_space<vmem>>, %arg6: memref<1x32xf32, #tpu.memory_space<vmem>>, %arg7: memref<1x32xf32, #tpu.memory_space<vmem>>, %arg8: memref<1x32xf32, #tpu.memory_space<vmem>>, %arg9: memref<16x32xf32, #tpu.memory_space<vmem>>, %arg10: memref<16x32xf32, #tpu.memory_space<vmem>>) attributes {dimension_semantics = [#tpu.dimension_semantics<parallel>, #tpu.dimension_semantics<arbitrary>], iteration_bounds = array<i64: 1, 1>, scalar_prefetch = 0 : i64, scratch_operands = 1 : i64, tpu.core_type = #tpu.core_type<tc>, window_params = [{transform_indices = @transform_0, window_bounds = array<i64: 16, 32>}, {transform_indices = @transform_1, window_bounds = array<i64: 32, 64>}, {transform_indices = @transform_2, window_bounds = array<i64: 1, 64>}, {transform_indices = @transform_3, window_bounds = array<i64: 64, 32>}, {pipeline_mode = #tpu.pipeline_mode<synchronous>, transform_indices = @transform_4, window_bounds = array<i64: 1, 32>}, {pipeline_mode = #tpu.pipeline_mode<synchronous>, transform_indices = @transform_5, window_bounds = array<i64: 1, 32>}, {pipeline_mode = #tpu.pipeline_mode<synchronous>, transform_indices = @transform_6, window_bounds = array<i64: 1, 32>}, {transform_indices = @transform_7, window_bounds = array<i64: 16, 32>}]} {
    %c0_i32 = arith.constant 0 : i32
    %0 = arith.cmpi eq, %arg1, %c0_i32 : i32
    %1 = arith.extui %0 : i1 to i32
    %c0_i32_0 = arith.constant 0 : i32
    %2 = arith.cmpi ne, %1, %c0_i32_0 : i32
    scf.if %2 {
      %cst_16 = arith.constant 0.000000e+00 : f32
      %21 = vector.broadcast %cst_16 : f32 to vector<16x32xf32>
      %c0_17 = arith.constant 0 : index
      %c0_18 = arith.constant 0 : index
      %22 = vector.load %arg10[%c0_17, %c0_18] : memref<16x32xf32, #tpu.memory_space<vmem>>, vector<16x32xf32>
      tpu.vector_store %arg10[%c0_17, %c0_18], %21 {strides = array<i32>} : memref<16x32xf32, #tpu.memory_space<vmem>>, vector<16x32xf32>,
    } else {
    }
    %c0 = arith.constant 0 : index
    %c0_1 = arith.constant 0 : index
    %3 = vector.load %arg2[%c0, %c0_1] : memref<16x32xf32, #tpu.memory_space<vmem>>, vector<16x32xf32>
    %4 = arith.truncf %3 : vector<16x32xf32> to vector<16x32xbf16>
    %c0_2 = arith.constant 0 : index
    %c0_3 = arith.constant 0 : index
    %5 = vector.load %arg3[%c0_2, %c0_3] : memref<32x64xbf16, #tpu.memory_space<vmem>>, vector<32x64xbf16>
    %cst = arith.constant dense<0.000000e+00> : vector<16x64xf32>
    %6 = tpu.matmul %4, %5, %cst {dimension_numbers = #tpu.dot_dimension_numbers<[1], [0], [0], [1], [0, 0, 1, 1], [], []>} : vector<16x32xbf16>, vector<32x64xbf16>, vector<16x64xf32> -> vector<16x64xf32>
    %c0_4 = arith.constant 0 : index
    %c0_5 = arith.constant 0 : index
    %7 = vector.load %arg4[%c0_4, %c0_5] : memref<1x64xf32, #tpu.memory_space<vmem>>, vector<1x64xf32>
    %8 = vector.broadcast %7 : vector<1x64xf32> to vector<16x64xf32>
    %9 = arith.addf %6, %8 : vector<16x64xf32>
    %cst_6 = arith.constant 0.000000e+00 : f32
    %10 = vector.broadcast %cst_6 : f32 to vector<16x64xf32>
    %11 = arith.maximumf %9, %10 : vector<16x64xf32>
    %c0_7 = arith.constant 0 : index
    %c0_8 = arith.constant 0 : index
    %12 = vector.load %arg10[%c0_7, %c0_8] : memref<16x32xf32, #tpu.memory_space<vmem>>, vector<16x32xf32>
    %13 = arith.truncf %11 : vector<16x64xf32> to vector<16x64xbf16>
    %c0_9 = arith.constant 0 : index
    %c0_10 = arith.constant 0 : index
    %14 = vector.load %arg5[%c0_9, %c0_10] : memref<64x32xbf16, #tpu.memory_space<vmem>>, vector<64x32xbf16>
    %cst_11 = arith.constant dense<0.000000e+00> : vector<16x32xf32>
    %15 = tpu.matmul %13, %14, %cst_11 {dimension_numbers = #tpu.dot_dimension_numbers<[1], [0], [0], [1], [0, 0, 1, 1], [], []>} : vector<16x64xbf16>, vector<64x32xbf16>, vector<16x32xf32> -> vector<16x32xf32>
    %16 = arith.addf %12, %15 : vector<16x32xf32>
    %c0_12 = arith.constant 0 : index
    %c0_13 = arith.constant 0 : index
    %17 = vector.load %arg10[%c0_12, %c0_13] : memref<16x32xf32, #tpu.memory_space<vmem>>, vector<16x32xf32>
    tpu.vector_store %arg10[%c0_12, %c0_13], %16 {strides = array<i32>} : memref<16x32xf32, #tpu.memory_space<vmem>>, vector<16x32xf32>,
    %c0_i32_14 = arith.constant 0 : i32
    %18 = arith.cmpi eq, %arg1, %c0_i32_14 : i32
    %19 = arith.extui %18 : i1 to i32
    %c0_i32_15 = arith.constant 0 : i32
    %20 = arith.cmpi ne, %19, %c0_i32_15 : i32
    scf.if %20 {
      %c0_16 = arith.constant 0 : index
      %c0_17 = arith.constant 0 : index
      %21 = vector.load %arg10[%c0_16, %c0_17] : memref<16x32xf32, #tpu.memory_space<vmem>>, vector<16x32xf32>
      %c0_18 = arith.constant 0 : index
      %c0_19 = arith.constant 0 : index
      %22 = vector.load %arg6[%c0_18, %c0_19] : memref<1x32xf32, #tpu.memory_space<vmem>>, vector<1x32xf32>
      %23 = vector.broadcast %22 : vector<1x32xf32> to vector<16x32xf32>
      %24 = arith.addf %21, %23 : vector<16x32xf32>
      %c0_20 = arith.constant 0 : index
      %c0_21 = arith.constant 0 : index
      %25 = vector.load %arg2[%c0_20, %c0_21] : memref<16x32xf32, #tpu.memory_space<vmem>>, vector<16x32xf32>
      %26 = arith.addf %24, %25 : vector<16x32xf32>
      %cst_22 = arith.constant dense<0.000000e+00> : vector<16xf32>
      %27 = vector.multi_reduction <add>, %26, %cst_22 [1] : vector<16x32xf32> to vector<16xf32>
      %28 = vector.shape_cast %27 : vector<16xf32> to vector<16x1xf32>
      %cst_23 = arith.constant 3.200000e+01 : f32
      %29 = vector.broadcast %cst_23 : f32 to vector<16x1xf32>
      %30 = arith.divf %28, %29 : vector<16x1xf32>
      %31 = vector.broadcast %30 : vector<16x1xf32> to vector<16x32xf32>
      %32 = arith.subf %26, %31 : vector<16x32xf32>
      %33 = arith.mulf %32, %32 : vector<16x32xf32>
      %cst_24 = arith.constant dense<0.000000e+00> : vector<16xf32>
      %34 = vector.multi_reduction <add>, %33, %cst_24 [1] : vector<16x32xf32> to vector<16xf32>
      %35 = vector.shape_cast %34 : vector<16xf32> to vector<16x1xf32>
      %cst_25 = arith.constant 3.200000e+01 : f32
      %36 = vector.broadcast %cst_25 : f32 to vector<16x1xf32>
      %37 = arith.divf %35, %36 : vector<16x1xf32>
      %cst_26 = arith.constant 9.99999974E-6 : f32
      %38 = vector.broadcast %cst_26 : f32 to vector<16x1xf32>
      %39 = arith.addf %37, %38 : vector<16x1xf32>
      %40 = math.rsqrt %39 : vector<16x1xf32>
      %41 = vector.broadcast %40 : vector<16x1xf32> to vector<16x32xf32>
      %42 = arith.mulf %32, %41 : vector<16x32xf32>
      %c0_27 = arith.constant 0 : index
      %c0_28 = arith.constant 0 : index
      %43 = vector.load %arg7[%c0_27, %c0_28] : memref<1x32xf32, #tpu.memory_space<vmem>>, vector<1x32xf32>
      %44 = vector.broadcast %43 : vector<1x32xf32> to vector<16x32xf32>
      %45 = arith.mulf %42, %44 : vector<16x32xf32>
      %c0_29 = arith.constant 0 : index
      %c0_30 = arith.constant 0 : index
      %46 = vector.load %arg8[%c0_29, %c0_30] : memref<1x32xf32, #tpu.memory_space<vmem>>, vector<1x32xf32>
      %47 = vector.broadcast %46 : vector<1x32xf32> to vector<16x32xf32>
      %48 = arith.addf %45, %47 : vector<16x32xf32>
      %c0_31 = arith.constant 0 : index
      %c0_32 = arith.constant 0 : index
      %49 = vector.load %arg9[%c0_31, %c0_32] : memref<16x32xf32, #tpu.memory_space<vmem>>, vector<16x32xf32>
      tpu.vector_store %arg9[%c0_31, %c0_32], %48 {strides = array<i32>} : memref<16x32xf32, #tpu.memory_space<vmem>>, vector<16x32xf32>,
    } else {
    }
    return
  }
  func.func @transform_0(%arg0: i32, %arg1: i32) -> (i32, i32) {
    %c0_i32 = arith.constant 0 : i32
    %c0_i32_0 = arith.constant 0 : i32
    return %arg0, %c0_i32 : i32, i32
  }
  func.func @transform_1(%arg0: i32, %arg1: i32) -> (i32, i32) {
    %c0_i32 = arith.constant 0 : i32
    %c0_i32_0 = arith.constant 0 : i32
    return %c0_i32, %arg1 : i32, i32
  }
  func.func @transform_2(%arg0: i32, %arg1: i32) -> (i32, i32) {
    %c0_i32 = arith.constant 0 : i32
    %c0_i32_0 = arith.constant 0 : i32
    return %c0_i32, %arg1 : i32, i32
  }
  func.func @transform_3(%arg0: i32, %arg1: i32) -> (i32, i32) {
    %c0_i32 = arith.constant 0 : i32
    %c0_i32_0 = arith.constant 0 : i32
    return %arg1, %c0_i32 : i32, i32
  }
  func.func @transform_4(%arg0: i32, %arg1: i32) -> (i32, i32) {
    %c0_i32 = arith.constant 0 : i32
    %c0_i32_0 = arith.constant 0 : i32
    %c0_i32_1 = arith.constant 0 : i32
    return %c0_i32, %c0_i32_0 : i32, i32
  }
  func.func @transform_5(%arg0: i32, %arg1: i32) -> (i32, i32) {
    %c0_i32 = arith.constant 0 : i32
    %c0_i32_0 = arith.constant 0 : i32
    %c0_i32_1 = arith.constant 0 : i32
    return %c0_i32, %c0_i32_0 : i32, i32
  }
  func.func @transform_6(%arg0: i32, %arg1: i32) -> (i32, i32) {
    %c0_i32 = arith.constant 0 : i32
    %c0_i32_0 = arith.constant 0 : i32
    %c0_i32_1 = arith.constant 0 : i32
    return %c0_i32, %c0_i32_0 : i32, i32
  }
  func.func @transform_7(%arg0: i32, %arg1: i32) -> (i32, i32) {
    %c0_i32 = arith.constant 0 : i32
    %c0_i32_0 = arith.constant 0 : i32
    return %arg0, %c0_i32 : i32, i32
  }
}

</mosaic_0001>

<llo_original>
// kernel: tpu_custom_call.1
$region0: #{tpu_custom_call.1}
  #allocation0 [shape = 'u32[]', space=smem, size = 0x4, offset = 0x4, fixed_abs, tag = 'smem constant byte address 0x4 - core index']
  #allocation1 [shape = 'u32[72,128]{1,0:T(1,128)}', space=vmem, size = 0x9000, scoped, tag = 'internal scratch']
  #allocation2 [shape = 'f32[16,32]{1,0:T(8,128)}', space=vmem, size = 0x2000, scoped, tag = 'scratch operand']
  %s0 = inlined_call_operand.vmem [shape: f32[16,32], index: 0, kind: input, shape index: {}]
  %s1 = inlined_call_operand.vmem [shape: bf16[32,64], index: 1, kind: input, shape index: {}]
  %s2 = inlined_call_operand.vmem [shape: f32[1,64], index: 2, kind: input, shape index: {}]
  %s3 = inlined_call_operand.vmem [shape: bf16[64,32], index: 3, kind: input, shape index: {}]
  %s4 = inlined_call_operand.vmem [shape: f32[1,32], index: 4, kind: input, shape index: {}]
  %s5 = inlined_call_operand.vmem [shape: f32[1,32], index: 5, kind: input, shape index: {}]
  %s6 = inlined_call_operand.vmem [shape: f32[1,32], index: 6, kind: input, shape index: {}]
  %s7 = inlined_call_operand.hbm [shape: f32[16,32], index: 7, kind: output, shape index: {}]
  %s8 = sld [smem:[#allocation0]]
  $region46: #{tpu_custom_call.1} parent=0
    _
  %s10 = ssub.s32 1, %s8
  %s11 = scalar_select 0, %s10, %s8
  $region1: #{tpu_custom_call.1} parent=0
    #allocation3 [shape = 'u8[8192]{0}', space=vmem, size = 0x2000, scoped, tag = 'output window, operand 0, single buffered']
    #allocation4 [shape = 's32[1]{0}', space=sflag, size = 0x4, scoped, tag = 'scoped memory for tpu_custom_call.1']
    %12 = vsyncpa [#allocation4], 0
    // Predicated region
    $region2: #{tpu_custom_call.1} parent=1 // pred_check
      _
    $region3: #{tpu_custom_call.1} parent=1 // pred_check_branch
      %14 = sbr.rel (0) target = $region5
    $region4: #{tpu_custom_call.1} parent=1 // pred_region
      _
    $region5: #{tpu_custom_call.1} parent=1 // pred_fallthru
      _
    // Predicated region
    $region6: #{tpu_custom_call.1} parent=1 // pred_check
      _
    $region7: #{tpu_custom_call.1} parent=1 // pred_check_branch
      %16 = sbr.rel (0) target = $region9
    $region8: #{tpu_custom_call.1} parent=1 // pred_region
      _
    $region9: #{tpu_custom_call.1} parent=1 // pred_fallthru
      _
    // Predicated region
    $region10: #{tpu_custom_call.1} parent=1 // pred_check
      _
    $region11: #{tpu_custom_call.1} parent=1 // pred_check_branch
      %18 = sbr.rel (0) target = $region13
    $region12: #{tpu_custom_call.1} parent=1 // pred_region
      _
    $region13: #{tpu_custom_call.1} parent=1 // pred_fallthru
      _
    // Predicated region
    $region14: #{tpu_custom_call.1} parent=1 // pred_check
      _
    $region15: #{tpu_custom_call.1} parent=1 // pred_check_branch
      %20 = sbr.rel (0) target = $region17
    $region16: #{tpu_custom_call.1} parent=1 // pred_region
      _
    $region17: #{tpu_custom_call.1} parent=1 // pred_fallthru
      _
    // Predicated region
    $region18: #{tpu_custom_call.1} parent=1 // pred_check
      _
    $region19: #{tpu_custom_call.1} parent=1 // pred_check_branch
      %22 = sbr.rel (0) target = $region21
    $region20: #{tpu_custom_call.1} parent=1 // pred_region
      _
    $region21: #{tpu_custom_call.1} parent=1 // pred_fallthru
      _
    // Predicated region
    $region22: #{tpu_custom_call.1} parent=1 // pred_check
      _
    $region23: #{tpu_custom_call.1} parent=1 // pred_check_branch
      %24 = sbr.rel (0) target = $region25
    $region24: #{tpu_custom_call.1} parent=1 // pred_region
      _
    $region25: #{tpu_custom_call.1} parent=1 // pred_fallthru
      _
    // Predicated region
    $region26: #{tpu_custom_call.1} parent=1 // pred_check
      _
    $region27: #{tpu_custom_call.1} parent=1 // pred_check_branch
      %26 = sbr.rel (0) target = $region29
    $region28: #{tpu_custom_call.1} parent=1 // pred_region
      _
    $region29: #{tpu_custom_call.1} parent=1 // pred_fallthru
      _
    %p28 = scmp.eq.s32.totalorder 0, 0
    // Predicated region
    $region30: #{tpu_custom_call.1} parent=1 // pred_check
      %p29 = pneg %p28
    $region31: #{tpu_custom_call.1} parent=1 // pred_check_branch
      %31 = sbr.rel (%p29) target = $region33
    $region32: #{tpu_custom_call.1} parent=1 // pred_region
      %vm32 = vcmask 261120
      %33 = vst.msk [vmem:[#allocation2] sm:$0xff] %vm32, 0.0
      %34 = vst.msk [vmem:[#allocation2 + $0x8] sm:$0xff] %vm32, 0.0
    $region33: #{tpu_custom_call.1} parent=1 // pred_fallthru
      _
    %v35 = vld [vmem:[%s0] sm:$0xff]
    %v36 = vld [vmem:[%s0 + $0x8] sm:$0xff]
    %v37 = vpack.c.bf16 %v36, %v35
    %v38 = vld [vmem:[%s1] sm:$0xf]
    %v39 = vld [vmem:[%s1 + $0x4] sm:$0xf]
    %v40 = vld [vmem:[%s1 + $0x8] sm:$0xf]
    %v41 = vld [vmem:[%s1 + $0xc] sm:$0xf]
    %v42 = vld [vmem:[%s2] sm:$0x1]
    %v44 = vperm.slane %v42, 0
    %v50 = vunpack.c.l.b16 %v38
    %v51 = vunpack.c.l.b16 %v39
    %v52 = vunpack.c.l.b16 %v40
    %v53 = vunpack.c.l.b16 %v41
    %v54 = vpack.c.b16 %v51, %v50
    %v55 = vpack.c.b16 %v53, %v52
    %vm58 = vcmask 261120
    %v60 = vsel %vm58, %v37, 0
    %62 = vmatpush.bf16.msra.mxu0 0
    %63 = vmatpush.bf16.msra.mxu0 0
    %64 = vmatpush.bf16.msra.mxu0 0
    %65 = vmatpush.bf16.msra.mxu0 0
    %66 = vmatpush.bf16.msra.mxu0 0
    %67 = vmatpush.bf16.msra.mxu0 0
    %68 = vmatpush.bf16.msra.mxu0 %v55
    %69 = vmatpush.bf16.msra.mxu0 %v54
    %70 = vmatmul.bf16.gmra.mxu0 %v60
    %v71 = vpop.f32.mrf.mxu0
    %v72 = vadd.f32 %v44, %v71
    %v73 = vpop.f32.mrf.mxu0
    %v74 = vadd.f32 %v44, %v73
    %75 = vdwg.mxu0
    %v76 = vmax.f32 %v72, 0.0
    %v77 = vmax.f32 %v74, 0.0
    %v78 = vld [vmem:[#allocation2] sm:$0xff]
    %v79 = vld [vmem:[#allocation2 + $0x8] sm:$0xff]
    %v80 = vpack.c.bf16 %v77, %v76
    %v81 = vld [vmem:[%s3] sm:$0xf]
    %v82 = vld [vmem:[%s3 + $0x4] sm:$0xf]
    %v83 = vld [vmem:[%s3 + $0x8] sm:$0xf]
    %v84 = vld [vmem:[%s3 + $0xc] sm:$0xf]
    %v85 = vld [vmem:[%s3 + $0x10] sm:$0xf]
    %v86 = vld [vmem:[%s3 + $0x14] sm:$0xf]
    %v87 = vld [vmem:[%s3 + $0x18] sm:$0xf]
    %v88 = vld [vmem:[%s3 + $0x1c] sm:$0xf]
    %v97 = vunpack.c.l.b16 %v81
    %v98 = vunpack.c.l.b16 %v82
    %v99 = vunpack.c.l.b16 %v83
    %v100 = vunpack.c.l.b16 %v84
    %v101 = vunpack.c.l.b16 %v85
    %v102 = vunpack.c.l.b16 %v86
    %v103 = vunpack.c.l.b16 %v87
    %v104 = vunpack.c.l.b16 %v88
    %v105 = vpack.c.b16 %v98, %v97
    %v106 = vpack.c.b16 %v100, %v99
    %v107 = vpack.c.b16 %v102, %v101
    %v108 = vpack.c.b16 %v104, %v103
    %vm113 = vcmask 523264
    %v115 = vsel %vm113, %v80, 0
    %117 = vmatpush.bf16.msra.mxu0 0
    %118 = vmatpush.bf16.msra.mxu0 0
    %119 = vmatpush.bf16.msra.mxu0 0
    %120 = vmatpush.bf16.msra.mxu0 0
    %121 = vmatpush.bf16.msra.mxu0 %v108
    %122 = vmatpush.bf16.msra.mxu0 %v107
    %123 = vmatpush.bf16.msra.mxu0 %v106
    %124 = vmatpush.bf16.msra.mxu0 %v105
    %125 = vmatmul.bf16.gmra.mxu0 %v115
    %v126 = vpop.f32.mrf.mxu0
    %v127 = vadd.f32 0.0, %v126
    %v128 = vpop.f32.mrf.mxu0
    %v129 = vadd.f32 0.0, %v128
    %130 = vdwg.mxu0
    %v131 = vadd.f32 %v78, %v127
    %v132 = vadd.f32 %v79, %v129
    %133 = vst.msk [vmem:[#allocation2] sm:$0xff] %vm58, %v131
    %134 = vst.msk [vmem:[#allocation2 + $0x8] sm:$0xff] %vm58, %v132
    // Predicated region
    $region34: #{tpu_custom_call.1} parent=1 // pred_check
      %p135 = pneg %p28
    $region35: #{tpu_custom_call.1} parent=1 // pred_check_branch
      %137 = sbr.rel (%p135) target = $region37
    $region36: #{tpu_custom_call.1} parent=1 // pred_region
      %v138 = vld [vmem:[#allocation2] sm:$0xff]
      %v139 = vld [vmem:[#allocation2 + $0x8] sm:$0xff]
      %v140 = vld [vmem:[%s4] sm:$0x1]
      %v142 = vperm.slane %v140, 0
      %v144 = vadd.f32 %v138, %v142
      %v145 = vadd.f32 %v139, %v142
      %v146 = vld [vmem:[%s0] sm:$0xff]
      %v147 = vld [vmem:[%s0 + $0x8] sm:$0xff]
      %v148 = vadd.f32 %v144, %v146
      %v149 = vadd.f32 %v145, %v147
      %v150 = vsel %vm58, %v148, 0.0
      %151 = vadd.xlane.f32.xlu0 %v150
      %v152 = vpop.xlane.xlu0 %151
      %v153 = vsel %vm58, %v149, 0.0
      %154 = vadd.xlane.f32.xlu0 %v153
      %v155 = vpop.xlane.xlu0 %154
      %v156 = vrcp.pop 32.0
      %v157 = vmul.f32 32.0, %v156
      %v158 = vsub.f32 1.0, %v157
      %v159 = vmul.f32 %v156, %v158
      %v160 = vadd.f32 %v156, %v159
      %vm161 = vweird.f32 %v156
      %v162 = vsel %vm161, %v156, %v160
      %v163 = vmul.f32 %v152, %v162
      %v164 = vmul.f32 %v155, %v162
      %v165 = vsub.f32 %v148, %v163
      %v166 = vsub.f32 %v149, %v164
      %v167 = vmul.f32 %v165, %v165
      %v168 = vmul.f32 %v166, %v166
      %v169 = vsel %vm58, %v167, 0.0
      %170 = vadd.xlane.f32.xlu0 %v169
      %v171 = vpop.xlane.xlu0 %170
      %v172 = vsel %vm58, %v168, 0.0
      %173 = vadd.xlane.f32.xlu0 %v172
      %v174 = vpop.xlane.xlu0 %173
      %v175 = vmul.f32 %v171, %v162
      %v176 = vmul.f32 %v174, %v162
      %v177 = vadd.f32 %v175, 1e-05
      %v178 = vadd.f32 %v176, 1e-05
      %v179 = vrsqrt.pop %v177
      %v180 = vmul.f32 %v179, %v177
      %v181 = vmul.f32 %v180, %v179
      %v182 = vmul.f32 0.5, %v181
      %v183 = vsub.f32 1.5, %v182
      %v184 = vmul.f32 %v179, %v183
      %vm185 = vweird.f32 %v177
      %vm186 = vweird.f32 %v179
      %vm187 = vmor %vm185, %vm186
      %v188 = vsel %vm187, %v179, %v184
      %v189 = vrsqrt.pop %v178
      %v190 = vmul.f32 %v189, %v178
      %v191 = vmul.f32 %v190, %v189
      %v192 = vmul.f32 0.5, %v191
      %v193 = vsub.f32 1.5, %v192
      %v194 = vmul.f32 %v189, %v193
      %vm195 = vweird.f32 %v178
      %vm196 = vweird.f32 %v189
      %vm197 = vmor %vm195, %vm196
      %v198 = vsel %vm197, %v189, %v194
      %v199 = vmul.f32 %v165, %v188
      %v200 = vmul.f32 %v166, %v198
      %v201 = vld [vmem:[%s5] sm:$0x1]
      %v203 = vperm.slane %v201, 0
      %v205 = vmul.f32 %v199, %v203
      %v206 = vmul.f32 %v200, %v203
      %v207 = vld [vmem:[%s6] sm:$0x1]
      %v209 = vperm.slane %v207, 0
      %v211 = vadd.f32 %v205, %v209
      %v212 = vadd.f32 %v206, %v209
      %213 = vst.msk [vmem:[#allocation3] sm:$0xff] %vm58, %v211
      %214 = vst.msk [vmem:[#allocation3 + $0x8] sm:$0xff] %vm58, %v212
    $region37: #{tpu_custom_call.1} parent=1 // pred_fallthru
      _
    // Predicated region
    $region38: #{tpu_custom_call.1} parent=1 // pred_check
      _
    $region39: #{tpu_custom_call.1} parent=1 // pred_check_branch
      %216 = sbr.rel (0) target = $region41
    $region40: #{tpu_custom_call.1} parent=1 // pred_region
      %218 = vsyncadd [#allocation4], 0
      %s219 = sshll.u32 [#allocation3], 4
      %s220 = int_to_ptr.vmem [resolvable:$true] %s219
      %s221 = sshll.u32 %s7, 4
      %s222 = int_to_ptr.hbm [resolvable:$true] %s221
      %227 = dma.vmem_to_hbm [thread:$0]  %s220, 256, %s222, [#allocation4], 128, 128, 8
    $region41: #{tpu_custom_call.1} parent=1 // pred_fallthru
      _
    // Predicated region
    $region42: #{tpu_custom_call.1} parent=1 // pred_check
      _
    $region43: #{tpu_custom_call.1} parent=1 // pred_check_branch
      %229 = sbr.rel (0) target = $region45
    $region44: #{tpu_custom_call.1} parent=1 // pred_region
      %231 = dma.done [#allocation4], 256
    $region45: #{tpu_custom_call.1} parent=1 // pred_fallthru
      _
    %232 = vsyncpa [#allocation4], 1

</llo_original>
